<compile_context>
chip_gen: v6e
topology: v6e:2x2x1
jax: 0.10.0
libtpu: 0.0.40
codegen_flags: <defaults>
</compile_context>

<pallas_src>
import math
from functools import partial

import jax
import jax.numpy as jnp
from jax import lax
from jax.experimental import pallas as pl
from jax.experimental.pallas import tpu as pltpu


def previt_kernel(patch_ref, w_ref, pos_ref, o_ref):
    # patch_ref: (TILE_R, Kpad) bf16   w_ref: (Kpad, Nout) bf16
    # pos_ref:   (TILE_R, Nout) f32 (conv bias already folded in)
    # o_ref:     (TILE_R, Nout) out_dtype
    acc = jnp.dot(patch_ref[...], w_ref[...], preferred_element_type=jnp.float32)
    o_ref[...] = (acc + pos_ref[...]).astype(o_ref.dtype)


def _round_up(x, m):
    return (x + m - 1) // m * m


def _chip_defaults():
    """(target_rows, vmem_limit_bytes) heuristics per TPU generation."""
    kind = ""
    try:
        kind = jax.devices()[0].device_kind.lower()
    except Exception:
        pass
    if "v5 lite" in kind or "v5e" in kind or "v5lite" in kind:
        return 128, 64 << 20      # v5e: 4x128^2 MXU, default scoped VMEM is only 16 MiB
    if "v7" in kind:
        return 1024, 48 << 20     # v7x: 64 MiB physical VMEM -> leave headroom
    return 2048, 64 << 20         # v6e (and default): 128 MiB physical VMEM


def _choose_block_rows(n, seq, k_pad, n_out, out_itemsize, target_rows, vmem_limit):
    """Rows per grid step = bt * seq (whole batch elements, so the pre-tiled pos
    embedding lines up).  Keep bt*seq a multiple of 16 (bf16 sublane granularity),
    stay inside the VMEM budget, and keep >= 2 grid steps when possible so both
    v7x TensorCores get work."""
    seq_mult = 16 // math.gcd(seq, 16)            # smallest bt with (bt*seq) % 16 == 0
    # Rough VMEM estimate: streamed patch/output double-buffered, constants generous.
    per_row = k_pad * 2 * 2 + n_out * out_itemsize * 2 + n_out * 4 * 2
    const_bytes = k_pad * n_out * 2 * 2
    budget = max(int(0.75 * vmem_limit) - const_bytes, seq_mult * seq * per_row)
    rows = min(target_rows, budget // per_row)
    bt = max(seq_mult, (rows // seq) // seq_mult * seq_mult)
    bt = min(bt, _round_up(max(n, 1), seq_mult))   # never tile past the batch
    if -(-n // bt) < 2 and n >= 2 * seq_mult:      # keep the grid >= 2 steps (2 TCs)
        bt = _round_up(-(-n // 2), seq_mult)
    return bt


def previt_trans(x, conv_w, conv_b, pos_emb, patch_size, *,
                 compute_dtype=jnp.bfloat16, out_dtype=None,
                 target_rows=None, vmem_limit_bytes=None,
                 single_buffer_constants=True):
    """x: (n, c, h, w) NCHW; conv_w: (out_ch, c, p, p); conv_b: (out_ch,);
    pos_emb: (1, seq, out_ch).  Returns (n, seq, out_ch) in out_dtype
    (default x.dtype).  Set out_dtype=jnp.bfloat16 when the downstream block
    computes in bf16 (halves output HBM traffic); the f32 accumulate + pos add
    stay in f32 inside the kernel either way (important on v5e's VPU)."""
    n, c, h, w = x.shape
    p = patch_size
    n_h, n_w = h // p, w // p
    seq = n_h * n_w
    k = c * p * p
    out_ch = conv_w.shape[0]
    out_dtype = x.dtype if out_dtype is None else out_dtype
    out_itemsize = jnp.dtype(out_dtype).itemsize

    d_rows, d_vmem = _chip_defaults()
    target_rows = d_rows if target_rows is None else target_rows
    vmem_limit_bytes = d_vmem if vmem_limit_bytes is None else vmem_limit_bytes

    LANE = 128
    k_pad = _round_up(k, LANE)              # lane-dense contraction dim (ViT K often already is)
    ch_pad = _round_up(out_ch, LANE)
    # Pad out_ch only when the extra HBM write traffic is small (<= 12.5%);
    # ViT widths (768/1024) pad for free, the demo's 32 stays unpadded.
    n_out = ch_pad if (ch_pad - out_ch) * 8 <= out_ch else out_ch

    bt = _choose_block_rows(n, seq, k_pad, n_out, out_itemsize,
                            target_rows, vmem_limit_bytes)
    tile_r = bt * seq
    n_padded = _round_up(n, bt)
    rows_padded = n_padded * seq

    # ---- All layout work lives in the wrapper; the kernel is a pure 2D GEMM ----
    # Patchify (im2col): (n,c,h,w) -> (n*seq, K) with K ordered (c,kh,kw) to match
    # the flattened conv weight.  allow_input_fusion lets XLA fuse this transpose
    # + pad + cast into the pallas_call input DMA when the wrapper is jitted.
    # TODO(synk): verify via the jitted HLO that the im2col fuses into the input
    # DMA; if not, accept NHWC input or gather (n_h,n_w) blocks via an index_map.
    patches = (x.reshape(n, c, n_h, p, n_w, p)
                 .transpose(0, 2, 4, 1, 3, 5)
                 .reshape(n * seq, k))
    patches = jnp.pad(patches, ((0, rows_padded - n * seq), (0, k_pad - k)))
    patches = patches.astype(compute_dtype)

    w_mat = conv_w.reshape(out_ch, k).T.astype(compute_dtype)         # (K, out_ch)
    w_mat = jnp.pad(w_mat, ((0, k_pad - k), (0, n_out - out_ch)))     # (Kpad, Nout)

    # Fold the conv bias into the positional embedding (kept in f32) and pre-tile
    # it to exactly one row tile so the kernel add needs no broadcast/reshape.
    pos = (pos_emb.reshape(seq, out_ch).astype(jnp.float32)
           + conv_b.reshape(1, out_ch).astype(jnp.float32))
    pos = jnp.pad(pos, ((0, 0), (0, n_out - out_ch)))                 # (seq, Nout)
    pos_tile = jnp.tile(pos, (bt, 1))                                  # (TILE_R, Nout)

    const_mode = {}
    if single_buffer_constants:
        # Constant index_map -> double buffering these only wastes VMEM.
        const_mode = dict(pipeline_mode=pl.Buffered(1))

    grid = (rows_padded // tile_r,)
    out2d = pl.pallas_call(
        previt_kernel,
        out_shape=jax.ShapeDtypeStruct((rows_padded, n_out), out_dtype),
        grid=grid,
        in_specs=[
            pl.BlockSpec((tile_r, k_pad), lambda i: (i, 0)),
            pl.BlockSpec((k_pad, n_out), lambda i: (0, 0), **const_mode),
            pl.BlockSpec((tile_r, n_out), lambda i: (0, 0), **const_mode),
        ],
        out_specs=pl.BlockSpec((tile_r, n_out), lambda i: (i, 0)),
        compiler_params=pltpu.CompilerParams(
            dimension_semantics=("parallel",),
            allow_input_fusion=[True, False, False],
            vmem_limit_bytes=vmem_limit_bytes,
        ),
    )(patches, w_mat, pos_tile)

    # Padded rows (pos-only garbage) and padded channels (zeros) are sliced off
    # before anything consumes the buffer; the HBM reshape is free.
    return out2d[: n * seq, :out_ch].reshape(n, seq, out_ch)


def reference(x, conv_w, conv_b, pos_emb, patch_size, compute_dtype=jnp.bfloat16):
    """Pure-JAX reference matching PreViTTrans.forward.  The matmul operands are
    rounded to bf16 exactly as the kernel does, so the comparison isolates
    plumbing errors from the deliberate bf16 quantization."""
    xq = x.astype(compute_dtype).astype(jnp.float32)
    wq = conv_w.astype(compute_dtype).astype(jnp.float32)
    y = lax.conv_general_dilated(
        xq, wq,
        window_strides=(patch_size, patch_size),
        padding="VALID",
        dimension_numbers=("NCHW", "OIHW", "NCHW"),
        preferred_element_type=jnp.float32,
    ) + conv_b.reshape(1, -1, 1, 1)
    n, oc, n_h, n_w = y.shape
    y = y.reshape(n, oc, n_h * n_w).transpose(0, 2, 1)
    return y + pos_emb


if __name__ == "__main__":
    # Small shapes consistent with the module.
    batch, in_channels, in_size = 2, 4, 16
    patch_size, out_channels = 4, 32
    seq_length = (in_size // patch_size) ** 2          # 16
    K = in_channels * patch_size * patch_size          # 64

    key = jax.random.PRNGKey(0)
    kx, kw, kb, kp = jax.random.split(key, 4)

    x = jax.random.normal(kx, (batch, in_channels, in_size, in_size), jnp.float32)

    # Deterministic parameter init (PyTorch-style bounds, synthetic values).
    fan_in = in_channels * patch_size * patch_size
    bound = 1.0 / float(jnp.sqrt(fan_in))
    conv_w = jax.random.uniform(
        kw, (out_channels, in_channels, patch_size, patch_size),
        jnp.float32, -bound, bound)
    conv_b = jax.random.uniform(kb, (out_channels,), jnp.float32, -bound, bound)
    pos_emb = 0.02 * jax.random.normal(kp, (1, seq_length, out_channels), jnp.float32)

    # NOTE: self.dropout is defined in PreViTTrans.__init__ but never applied
    # in forward(), so no dropout is implemented here (matches the reference).

    def run(single_buf):
        fn = jax.jit(partial(previt_trans, patch_size=patch_size,
                             single_buffer_constants=single_buf))
        return jax.block_until_ready(fn(x, conv_w, conv_b, pos_emb))

    try:
        out = run(True)        # single-buffered constant operands (preferred)
    except Exception:
        out = run(False)       # fallback: default double buffering

    ref = reference(x, conv_w, conv_b, pos_emb, patch_size)
    assert out.shape == (batch, seq_length, out_channels), out.shape
    max_err = float(jnp.max(jnp.abs(out - ref)))
    assert jnp.allclose(out, ref, atol=1e-4, rtol=1e-4), \
        f"mismatch vs reference, max abs err {max_err}"

    print("KERNEL_OK")
</pallas_src>

<mosaic_0001>
module attributes {stable_mosaic.version = 11 : i64} {
  func.func @previt_kernel(%arg0: i32, %arg1: memref<16x128xbf16, #tpu.memory_space<vmem>>, %arg2: memref<128x32xbf16, #tpu.memory_space<vmem>>, %arg3: memref<16x32xf32, #tpu.memory_space<vmem>>, %arg4: memref<16x32xf32, #tpu.memory_space<vmem>>) attributes {dimension_semantics = [#tpu.dimension_semantics<parallel>], iteration_bounds = array<i64: 2>, scalar_prefetch = 0 : i64, scratch_operands = 0 : i64, tpu.core_type = #tpu.core_type<tc>, window_params = [{transform_indices = @transform_0, window_bounds = array<i64: 16, 128>}, {pipeline_mode = #tpu.pipeline_mode<synchronous>, transform_indices = @transform_1, window_bounds = array<i64: 128, 32>}, {pipeline_mode = #tpu.pipeline_mode<synchronous>, transform_indices = @transform_2, window_bounds = array<i64: 16, 32>}, {transform_indices = @transform_3, window_bounds = array<i64: 16, 32>}]} {
    %c0 = arith.constant 0 : index
    %c0_0 = arith.constant 0 : index
    %0 = vector.load %arg1[%c0, %c0_0] : memref<16x128xbf16, #tpu.memory_space<vmem>>, vector<16x128xbf16>
    %c0_1 = arith.constant 0 : index
    %c0_2 = arith.constant 0 : index
    %1 = vector.load %arg2[%c0_1, %c0_2] : memref<128x32xbf16, #tpu.memory_space<vmem>>, vector<128x32xbf16>
    %cst = arith.constant dense<0.000000e+00> : vector<16x32xf32>
    %2 = tpu.matmul %0, %1, %cst {dimension_numbers = #tpu.dot_dimension_numbers<[1], [0], [0], [1], [0, 0, 1, 1], [], []>} : vector<16x128xbf16>, vector<128x32xbf16>, vector<16x32xf32> -> vector<16x32xf32>
    %c0_3 = arith.constant 0 : index
    %c0_4 = arith.constant 0 : index
    %3 = vector.load %arg3[%c0_3, %c0_4] : memref<16x32xf32, #tpu.memory_space<vmem>>, vector<16x32xf32>
    %4 = arith.addf %2, %3 : vector<16x32xf32>
    %c0_5 = arith.constant 0 : index
    %c0_6 = arith.constant 0 : index
    %5 = vector.load %arg4[%c0_5, %c0_6] : memref<16x32xf32, #tpu.memory_space<vmem>>, vector<16x32xf32>
    tpu.vector_store %arg4[%c0_5, %c0_6], %4 {strides = array<i32>} : memref<16x32xf32, #tpu.memory_space<vmem>>, vector<16x32xf32>,
    return
  }
  func.func @transform_0(%arg0: i32) -> (i32, i32) {
    %c0_i32 = arith.constant 0 : i32
    %c0_i32_0 = arith.constant 0 : i32
    return %arg0, %c0_i32 : i32, i32
  }
  func.func @transform_1(%arg0: i32) -> (i32, i32) {
    %c0_i32 = arith.constant 0 : i32
    %c0_i32_0 = arith.constant 0 : i32
    %c0_i32_1 = arith.constant 0 : i32
    return %c0_i32, %c0_i32_0 : i32, i32
  }
  func.func @transform_2(%arg0: i32) -> (i32, i32) {
    %c0_i32 = arith.constant 0 : i32
    %c0_i32_0 = arith.constant 0 : i32
    %c0_i32_1 = arith.constant 0 : i32
    return %c0_i32, %c0_i32_0 : i32, i32
  }
  func.func @transform_3(%arg0: i32) -> (i32, i32) {
    %c0_i32 = arith.constant 0 : i32
    %c0_i32_0 = arith.constant 0 : i32
    return %arg0, %c0_i32 : i32, i32
  }
}

module attributes {stable_mosaic.version = 11 : i64} {
  func.func @previt_kernel(%arg0: i32, %arg1: memref<16x128xbf16, #tpu.memory_space<vmem>>, %arg2: memref<128x32xbf16, #tpu.memory_space<vmem>>, %arg3: memref<16x32xf32, #tpu.memory_space<vmem>>, %arg4: memref<16x32xf32, #tpu.memory_space<vmem>>) attributes {dimension_semantics = [#tpu.dimension_semantics<parallel>], iteration_bounds = array<i64: 2>, scalar_prefetch = 0 : i64, scratch_operands = 0 : i64, tpu.core_type = #tpu.core_type<tc>, window_params = [{transform_indices = @transform_0, window_bounds = array<i64: 16, 128>}, {pipeline_mode = #tpu.pipeline_mode<synchronous>, transform_indices = @transform_1, window_bounds = array<i64: 128, 32>}, {pipeline_mode = #tpu.pipeline_mode<synchronous>, transform_indices = @transform_2, window_bounds = array<i64: 16, 32>}, {transform_indices = @transform_3, window_bounds = array<i64: 16, 32>}]} {
    %c0 = arith.constant 0 : index
    %c0_0 = arith.constant 0 : index
    %0 = vector.load %arg1[%c0, %c0_0] : memref<16x128xbf16, #tpu.memory_space<vmem>>, vector<16x128xbf16>
    %c0_1 = arith.constant 0 : index
    %c0_2 = arith.constant 0 : index
    %1 = vector.load %arg2[%c0_1, %c0_2] : memref<128x32xbf16, #tpu.memory_space<vmem>>, vector<128x32xbf16>
    %cst = arith.constant dense<0.000000e+00> : vector<16x32xf32>
    %2 = tpu.matmul %0, %1, %cst {dimension_numbers = #tpu.dot_dimension_numbers<[1], [0], [0], [1], [0, 0, 1, 1], [], []>} : vector<16x128xbf16>, vector<128x32xbf16>, vector<16x32xf32> -> vector<16x32xf32>
    %c0_3 = arith.constant 0 : index
    %c0_4 = arith.constant 0 : index
    %3 = vector.load %arg3[%c0_3, %c0_4] : memref<16x32xf32, #tpu.memory_space<vmem>>, vector<16x32xf32>
    %4 = arith.addf %2, %3 : vector<16x32xf32>
    %c0_5 = arith.constant 0 : index
    %c0_6 = arith.constant 0 : index
    %5 = vector.load %arg4[%c0_5, %c0_6] : memref<16x32xf32, #tpu.memory_space<vmem>>, vector<16x32xf32>
    tpu.vector_store %arg4[%c0_5, %c0_6], %4 {strides = array<i32>} : memref<16x32xf32, #tpu.memory_space<vmem>>, vector<16x32xf32>,
    return
  }
  func.func @transform_0(%arg0: i32) -> (i32, i32) {
    %c0_i32 = arith.constant 0 : i32
    %c0_i32_0 = arith.constant 0 : i32
    return %arg0, %c0_i32 : i32, i32
  }
  func.func @transform_1(%arg0: i32) -> (i32, i32) {
    %c0_i32 = arith.constant 0 : i32
    %c0_i32_0 = arith.constant 0 : i32
    %c0_i32_1 = arith.constant 0 : i32
    return %c0_i32, %c0_i32_0 : i32, i32
  }
  func.func @transform_2(%arg0: i32) -> (i32, i32) {
    %c0_i32 = arith.constant 0 : i32
    %c0_i32_0 = arith.constant 0 : i32
    %c0_i32_1 = arith.constant 0 : i32
    return %c0_i32, %c0_i32_0 : i32, i32
  }
  func.func @transform_3(%arg0: i32) -> (i32, i32) {
    %c0_i32 = arith.constant 0 : i32
    %c0_i32_0 = arith.constant 0 : i32
    return %arg0, %c0_i32 : i32, i32
  }
}

</mosaic_0001>

<llo_original>
// kernel: previt_trans.2
$region0: #{previt_trans.2}
  #allocation0 [shape = 'u32[]', space=smem, size = 0x4, offset = 0x4, fixed_abs, tag = 'smem constant byte address 0x4 - core index']
  #allocation1 [shape = 'u32[144,128]{1,0:T(1,128)}', space=vmem, size = 0x12000, scoped, tag = 'internal scratch']
  #allocation2 [shape = 'u32[2048]{0}', space=vmem, size = 0x2000, scoped, tag = 'scoped memory for previt_trans.2']
  #allocation3 [shape = 'u32[2048]{0}', space=vmem, size = 0x2000, scoped, tag = 'scoped memory for previt_trans.2']
  #allocation4 [shape = 'u32[2048]{0}', space=vmem, size = 0x2000, scoped, tag = 'scoped memory for previt_trans.2']
  #allocation5 [shape = 'u32[2048]{0}', space=vmem, size = 0x2000, scoped, tag = 'scoped memory for previt_trans.2']
  #allocation6 [shape = 'u32[2048]{0}', space=vmem, size = 0x2000, scoped, tag = 'scoped memory for previt_trans.2']
  %s0 = inlined_call_operand.vmem [shape: bf16[128,32], index: 0, kind: input, shape index: {}]
  %s1 = inlined_call_operand.vmem [shape: f32[16,32], index: 1, kind: input, shape index: {}]
  %s2 = inlined_call_operand.vmem [shape: bf16[32,64], index: 2, kind: input, shape index: {}]
  %s3 = inlined_call_operand.<no memory space> [shape: bf16[], index: 3, kind: input, shape index: {}]
  %s4 = inlined_call_operand.hbm [shape: f32[32,32], index: 4, kind: output, shape index: {}]
  %s5 = sld [smem:[#allocation0]]
  $region45: #{previt_trans.2} parent=0
    _
  %s7 = ssub.s32 1, %s5
  %s8 = scalar_select 0, %s7, %s5
  %v9 = vstv %s3
  %v10 = vunpack.i.l.bf16 %v9
  %v12 = vunpack.i.h.bf16 %v9
  $region1: #{previt_trans.2} parent=0
    #allocation7 [shape = 'u8[16384]{0}', space=vmem, size = 0x4000, scoped, tag = 'output window, operand 0']
    #allocation8 [shape = 's32[2]{0}', space=sflag, size = 0x8, scoped, tag = 'scoped memory for previt_trans.2']
    %14 = vsyncpa [#allocation8], 0
    %s15 = scalar_lea.sflag [#allocation8], 1
    %16 = vsyncpa %s15, 0
    loop: start=0, step=1, limit=4
    $region2: #{previt_trans.2} parent=1 // loop_pre_header
      _
    $region3: #{previt_trans.2} parent=1 // loop_header
      %s18 = sphi 0, %s22
      %p19 = scmp.ge.s32.totalorder %s18, 4
      %s28 = sphi 0, %s30
      %s31 = sphi 0, %s28
      %s32 = sphi 0, %s31
      %s48 = sphi 0, %s32
      %s52 = sphi 0, %s52
      %s54 = sphi 0, %s52
      %s55 = sphi 0, %s54
      %s69 = sphi 0, %s55
      %s73 = sphi 0, %s73
      %s75 = sphi 0, %s73
      %s76 = sphi 0, %s75
      %s90 = sphi 0, %s76
      %s96 = sphi 0, %s98
      %s99 = sphi 0, %s96
      %s100 = sphi 0, %s99
      %s116 = sphi 0, %s100
    $region4: #{previt_trans.2} parent=1 // loop_header_branch
      %21 = sbr.rel (%p19) target = $region8
    $region5: #{previt_trans.2} parent=1 // loop_body
      %s23 = ssub.s32 %s18, 1
      %s24 = ssub.s32 %s18, 2
      %s25 = sadd.s32 %s18, 1
      %s26 = ssub.s32 %s18, %s25
      %p27 = scmp.eq.s32.totalorder %s26, 0
      %s29 = sadd.s32 %s28, 1
      %s30 = scalar_select %p27, %s28, %s29
      %p33 = pneg %p27
      %p34 = scmp.eq.s32.totalorder %s18, 1
      %p35 = por %p33, %p34
      %p36 = scmp.ne.s32.totalorder %s28, %s31
      %p37 = scmp.eq.s32.totalorder %s18, 0
      %p38 = por %p36, %p37
      %p39 = scmp.ne.s32.totalorder %s28, %s31
      %p40 = scmp.eq.s32.totalorder %s23, 1
      %p41 = por %p39, %p40
      %p42 = scmp.ne.s32.totalorder %s31, %s32
      %p43 = scmp.eq.s32.totalorder %s23, 0
      %p44 = por %p42, %p43
      %p45 = scmp.ne.s32.totalorder %s31, %s32
      %p46 = scmp.eq.s32.totalorder %s24, 1
      %p47 = por %p45, %p46
      %p49 = scmp.ne.s32.totalorder %s32, %s48
      %p50 = scmp.eq.s32.totalorder %s24, 0
      %p51 = por %p49, %p50
      %s53 = sadd.s32 %s52, 1
      %p56 = scmp.eq.s32.totalorder %s18, 1
      %p57 = scmp.ne.s32.totalorder %s52, %s54
      %p58 = scmp.eq.s32.totalorder %s18, 0
      %p59 = por %p57, %p58
      %p60 = scmp.ne.s32.totalorder %s52, %s54
      %p61 = scmp.eq.s32.totalorder %s23, 1
      %p62 = por %p60, %p61
      %p63 = scmp.ne.s32.totalorder %s54, %s55
      %p64 = scmp.eq.s32.totalorder %s23, 0
      %p65 = por %p63, %p64
      %p66 = scmp.ne.s32.totalorder %s54, %s55
      %p67 = scmp.eq.s32.totalorder %s24, 1
      %p68 = por %p66, %p67
      %p70 = scmp.ne.s32.totalorder %s55, %s69
      %p71 = scmp.eq.s32.totalorder %s24, 0
      %p72 = por %p70, %p71
      %s74 = sadd.s32 %s73, 1
      %p77 = scmp.eq.s32.totalorder %s18, 1
      %p78 = scmp.ne.s32.totalorder %s73, %s75
      %p79 = scmp.eq.s32.totalorder %s18, 0
      %p80 = por %p78, %p79
      %p81 = scmp.ne.s32.totalorder %s73, %s75
      %p82 = scmp.eq.s32.totalorder %s23, 1
      %p83 = por %p81, %p82
      %p84 = scmp.ne.s32.totalorder %s75, %s76
      %p85 = scmp.eq.s32.totalorder %s23, 0
      %p86 = por %p84, %p85
      %p87 = scmp.ne.s32.totalorder %s75, %s76
      %p88 = scmp.eq.s32.totalorder %s24, 1
      %p89 = por %p87, %p88
      %p91 = scmp.ne.s32.totalorder %s76, %s90
      %p92 = scmp.eq.s32.totalorder %s24, 0
      %p93 = por %p91, %p92
      %s94 = ssub.s32 %s18, %s25
      %p95 = scmp.eq.s32.totalorder %s94, 0
      %s97 = sadd.s32 %s96, 1
      %s98 = scalar_select %p95, %s96, %s97
      %p101 = pneg %p95
      %p102 = scmp.eq.s32.totalorder %s18, 1
      %p103 = por %p101, %p102
      %p104 = scmp.ne.s32.totalorder %s96, %s99
      %p105 = scmp.eq.s32.totalorder %s18, 0
      %p106 = por %p104, %p105
      %p107 = scmp.ne.s32.totalorder %s96, %s99
      %p108 = scmp.eq.s32.totalorder %s23, 1
      %p109 = por %p107, %p108
      %p110 = scmp.ne.s32.totalorder %s99, %s100
      %p111 = scmp.eq.s32.totalorder %s23, 0
      %p112 = por %p110, %p111
      %p113 = scmp.ne.s32.totalorder %s99, %s100
      %p114 = scmp.eq.s32.totalorder %s24, 1
      %p115 = por %p113, %p114
      %p117 = scmp.ne.s32.totalorder %s100, %s116
      %p118 = scmp.eq.s32.totalorder %s24, 0
      %p119 = por %p117, %p118
      %p120 = scmp.le.s32.totalorder 1, %s18
      %p121 = scmp.lt.s32.totalorder %s18, 3
      %p122 = pnand %p120, %p121
      %p123 = pneg %p122
      // Predicated region
      $region9: #{previt_trans.2} parent=5 // pred_check
        _
      $region10: #{previt_trans.2} parent=5 // pred_check_branch
        %125 = sbr.rel (%p122) target = $region12
      $region11: #{previt_trans.2} parent=5 // pred_region
        %s126 = ssub.s32 %s18, 1
        // Predicated region
        $region13: #{previt_trans.2} parent=11 // pred_check
          %p127 = pneg %p65
        $region14: #{previt_trans.2} parent=11 // pred_check_branch
          %129 = sbr.rel (%p127) target = $region16
        $region15: #{previt_trans.2} parent=11 // pred_region
          _
        $region16: #{previt_trans.2} parent=11 // pred_fallthru
          _
        // Predicated region
        $region17: #{previt_trans.2} parent=11 // pred_check
          %p130 = pneg %p86
        $region18: #{previt_trans.2} parent=11 // pred_check_branch
          %132 = sbr.rel (%p130) target = $region20
        $region19: #{previt_trans.2} parent=11 // pred_region
          _
        $region20: #{previt_trans.2} parent=11 // pred_fallthru
          _
      $region12: #{previt_trans.2} parent=5 // pred_fallthru
        _
      %p133 = scmp.lt.s32.totalorder %s18, 2
      // Predicated region
      $region21: #{previt_trans.2} parent=5 // pred_check
        %p134 = pneg %p133
      $region22: #{previt_trans.2} parent=5 // pred_check_branch
        %136 = sbr.rel (%p134) target = $region24
      $region23: #{previt_trans.2} parent=5 // pred_region
        // Predicated region
        $region25: #{previt_trans.2} parent=23 // pred_check
          %p137 = pneg %p38
        $region26: #{previt_trans.2} parent=23 // pred_check_branch
          %139 = sbr.rel (%p137) target = $region28
        $region27: #{previt_trans.2} parent=23 // pred_region
          %s140 = smul.u32 2, %s18
          %p141 = scmp.lt.s32.totalorder %s140, 3
          %s142 = scalar_select %p141, %s140, 3
          %s143 = smul.addr %s142, 4
          %s144 = scalar_lea.vmem %s2, %s143
          %s145 = smul.u32 2, %s18
        $region28: #{previt_trans.2} parent=23 // pred_fallthru
          _
      $region24: #{previt_trans.2} parent=5 // pred_fallthru
        _
      %p146 = scmp.le.s32.totalorder 1, %s18
      %p147 = scmp.lt.s32.totalorder %s18, 3
      %p148 = pnand %p146, %p147
      %p149 = pneg %p148
      // Predicated region
      $region29: #{previt_trans.2} parent=5 // pred_check
        _
      $region30: #{previt_trans.2} parent=5 // pred_check_branch
        %151 = sbr.rel (%p148) target = $region32
      $region31: #{previt_trans.2} parent=5 // pred_region
        #allocation9 [shape = 'u8[4096]{0}', space=vmem, size = 0x1000, dematerialized = true, scoped, tag = 'FusionAdapter Buffer %fusion.1 = bf16[32,128]{1,0:T(8,128)(2,1)} fusion(%param_2.1, %param_3), kind=kLoop, calls=%fused_computation.3.clone, metadata={op_name="jit(previt_trans)/jit(_pad)/pad" stack_frame_id=11}']
        %s152 = ssub.s32 %s18, 1
        %s153 = smul.u32 2, %s23
        %p154 = scmp.lt.s32.totalorder %s153, 3
        %s155 = scalar_select %p154, %s153, 3
        %s156 = smul.addr %s155, 4
        %s157 = scalar_lea.vmem %s2, %s156
        %p158 = pneg %p44
        %p159 = pneg %p41
        %p160 = pneg %p65
        %p161 = pneg %p62
        %p162 = pneg %p86
        %p163 = pneg %p83
        %p164 = pneg %p112
        %p165 = pneg %p109
        %s166 = sand.u32 %s99, 1
        %s167 = scalar_lea.sflag [#allocation8], %s166
        %s168 = sand.u32 %s99, 1
        %s169 = smul.addr %s168, 16
        %s170 = scalar_lea.vmem [#allocation7], %s169
        %s171 = smul.u32 2, %s23
        %p172 = scmp.lt.s32.totalorder %s171, 3
        %s173 = scalar_select %p172, %s171, 3
        %s174 = smul.addr %s173, 4
        %s175 = scalar_lea.vmem %s2, %s174
        %s176 = smul.u32 2, %s23
        %s177 = smul.u32 2, %s23
        %s179 = sor.u32 255, 127
        %s180 = sand.u32 %s179, 85
        %s181 = sshrl.u32 %s180, 1
        %s182 = sor.u32 %s180, %s181
        %s183 = sand.u32 51, %s182
        %s184 = sshrl.u32 %s183, 2
        %s185 = sor.u32 %s183, %s184
        %s186 = sand.u32 15, %s185
        %v187 = vld [vmem:[%s175] sm:%s186]
        %v188 = vunpack.c.l.bf16 %v187
        %v189 = vunpack.c.h.bf16 %v187
        %v190 = vlaneseq
        %v191 = vand.u32 %v190, 127
        %vm193 = vcmp.lt.s32.totalorder %v191, 64
        %v194 = vsel %vm193, %v188, %v10
        %v195 = vpack.c.bf16 0.0, %v194
        %s197 = ssub.s32 16, 1
        %198 = vst [vmem:[#allocation9] sm:%s197] %v195
        %s199 = scalar_lea.vmem %s175, 4
        %s201 = sor.u32 255, 127
        %s202 = sand.u32 %s201, 85
        %s203 = sshrl.u32 %s202, 1
        %s204 = sor.u32 %s202, %s203
        %s205 = sand.u32 51, %s204
        %s206 = sshrl.u32 %s205, 2
        %s207 = sor.u32 %s205, %s206
        %s208 = sand.u32 15, %s207
        %v209 = vld [vmem:[%s199] sm:%s208]
        %v210 = vunpack.c.l.bf16 %v209
        %v211 = vunpack.c.h.bf16 %v209
        %v212 = vlaneseq
        %v213 = vand.u32 %v212, 127
        %vm215 = vcmp.lt.s32.totalorder %v213, 64
        %v216 = vsel %vm215, %v210, %v10
        %s217 = scalar_lea.vmem [#allocation9], 4
        %v218 = vpack.c.bf16 0.0, %v216
        %s220 = ssub.s32 16, 1
        %221 = vst [vmem:[%s217] sm:%s220] %v218
        %v223 = vld [vmem:[#allocation9] sm:$0xf]
        %v224 = vld [vmem:[#allocation9 + $0x4] sm:$0xf]
        %v225 = vld [vmem:[%s0] sm:$0xf]
        %v226 = vld [vmem:[%s0 + $0x4] sm:$0xf]
        %v227 = vld [vmem:[%s0 + $0x8] sm:$0xf]
        %v228 = vld [vmem:[%s0 + $0xc] sm:$0xf]
        %v229 = vld [vmem:[%s0 + $0x10] sm:$0xf]
        %v230 = vld [vmem:[%s0 + $0x14] sm:$0xf]
        %v231 = vld [vmem:[%s0 + $0x18] sm:$0xf]
        %v232 = vld [vmem:[%s0 + $0x1c] sm:$0xf]
        %v233 = vld [vmem:[%s0 + $0x20] sm:$0xf]
        %v234 = vld [vmem:[%s0 + $0x24] sm:$0xf]
        %v235 = vld [vmem:[%s0 + $0x28] sm:$0xf]
        %v236 = vld [vmem:[%s0 + $0x2c] sm:$0xf]
        %v237 = vld [vmem:[%s0 + $0x30] sm:$0xf]
        %v238 = vld [vmem:[%s0 + $0x34] sm:$0xf]
        %v239 = vld [vmem:[%s0 + $0x38] sm:$0xf]
        %v240 = vld [vmem:[%s0 + $0x3c] sm:$0xf]
        %v241 = vld [vmem:[%s1] sm:$0xff]
        %v242 = vld [vmem:[%s1 + $0x8] sm:$0xff]
        %v245 = vunpack.c.l.b16 %v223
        %v246 = vunpack.c.l.b16 %v224
        %v247 = vpack.c.b16 %v246, %v245
        %v265 = vunpack.c.l.b16 %v225
        %v266 = vunpack.c.l.b16 %v226
        %v267 = vunpack.c.l.b16 %v227
        %v268 = vunpack.c.l.b16 %v228
        %v269 = vunpack.c.l.b16 %v229
        %v270 = vunpack.c.l.b16 %v230
        %v271 = vunpack.c.l.b16 %v231
        %v272 = vunpack.c.l.b16 %v232
        %v273 = vunpack.c.l.b16 %v233
        %v274 = vunpack.c.l.b16 %v234
        %v275 = vunpack.c.l.b16 %v235
        %v276 = vunpack.c.l.b16 %v236
        %v277 = vunpack.c.l.b16 %v237
        %v278 = vunpack.c.l.b16 %v238
        %v279 = vunpack.c.l.b16 %v239
        %v280 = vunpack.c.l.b16 %v240
        %v281 = vpack.c.b16 %v266, %v265
        %v282 = vpack.c.b16 %v268, %v267
        %v283 = vpack.c.b16 %v270, %v269
        %v284 = vpack.c.b16 %v272, %v271
        %v285 = vpack.c.b16 %v274, %v273
        %v286 = vpack.c.b16 %v276, %v275
        %v287 = vpack.c.b16 %v278, %v277
        %v288 = vpack.c.b16 %v280, %v279
        %297 = vmatprep.subr.bf16.mxu0 0
        %298 = vmatpush1.bf16.msra.mxu0 %v288
        %299 = vmatprep.subr.bf16.mxu0 0
        %300 = vmatpush1.bf16.msra.mxu0 %v287
        %301 = vmatprep.subr.bf16.mxu0 0
        %302 = vmatpush1.bf16.msra.mxu0 %v286
        %303 = vmatprep.subr.bf16.mxu0 0
        %304 = vmatpush1.bf16.msra.mxu0 %v285
        %305 = vmatprep.subr.bf16.mxu0 0
        %306 = vmatpush1.bf16.msra.mxu0 %v284
        %307 = vmatprep.subr.bf16.mxu0 0
        %308 = vmatpush1.bf16.msra.mxu0 %v283
        %309 = vmatprep.subr.bf16.mxu0 0
        %310 = vmatpush1.bf16.msra.mxu0 %v282
        %311 = vmatprep.subr.bf16.mxu0 0
        %312 = vmatpush1.bf16.msra.mxu0 %v281
        %313 = vmatprep.subr.bf16.mxu0 0
        %314 = vmatpush2.bf16.msra.mxu0 0
        %315 = vmatprep.subr.bf16.mxu0 0
        %316 = vmatpush2.bf16.msra.mxu0 0
        %317 = vmatprep.subr.bf16.mxu0 0
        %318 = vmatpush2.bf16.msra.mxu0 0
        %319 = vmatprep.subr.bf16.mxu0 0
        %320 = vmatpush2.bf16.msra.mxu0 0
        %321 = vmatprep.subr.bf16.mxu0 0
        %322 = vmatpush2.bf16.msra.mxu0 0
        %323 = vmatprep.subr.bf16.mxu0 0
        %324 = vmatpush2.bf16.msra.mxu0 0
        %325 = vmatprep.subr.bf16.mxu0 0
        %326 = vmatpush2.bf16.msra.mxu0 0
        %327 = vmatprep.subr.bf16.mxu0 0
        %328 = vmatpush2.bf16.msra.mxu0 0
        %329 = vmatprep.mubr.bf16.mxu0 0
        %330 = vmatmul.mubr.bf16.gmra.mxu0 %v247
        %v331 = vpop.f32.mrf.mxu0
        %v332 = vadd.f32 %v241, %v331
        %v333 = vpop.f32.mrf.mxu0
        %v334 = vpop.f32.mrf.mxu0
        %v335 = vadd.f32 %v242, %v334
        %v336 = vpop.f32.mrf.mxu0
        %337 = vdwg.mxu0
        %vm338 = vcmask 261120
        %339 = vst.msk [vmem:[%s170] sm:$0xff] %vm338, %v332
        %340 = vst.msk [vmem:[%s170 + $0x8] sm:$0xff] %vm338, %v335
        %s341 = sand.u32 %s99, 1
        %s342 = scalar_lea.sflag [#allocation8], %s341
        %s343 = sand.u32 %s99, 1
        %s344 = smul.addr %s343, 16
        %s345 = scalar_lea.vmem [#allocation7], %s344
        // Predicated region
        $region33: #{previt_trans.2} parent=31 // pred_check
          %p346 = pneg %p109
        $region34: #{previt_trans.2} parent=31 // pred_check_branch
          %348 = sbr.rel (%p346) target = $region36
        $region35: #{previt_trans.2} parent=31 // pred_region
          %s349 = smul.u32 2, %s23
          %s351 = ssub.s32 256, 256
          %352 = vsyncadd %s342, %s351
          %s353 = smul.addr %s349, 128
          %s354 = scalar_lea.hbm %s4, %s353
          %s355 = sshll.u32 %s345, 4
          %s356 = int_to_ptr.vmem [resolvable:$true] %s355
          %361 = dma.vmem_to_hbm [thread:$0]  %s356, 256, %s354, %s342, 128, 128, 8
        $region36: #{previt_trans.2} parent=31 // pred_fallthru
          _
      $region32: #{previt_trans.2} parent=5 // pred_fallthru
        _
      %p362 = scmp.le.s32.totalorder 2, %s18
      // Predicated region
      $region37: #{previt_trans.2} parent=5 // pred_check
        %p363 = pneg %p362
      $region38: #{previt_trans.2} parent=5 // pred_check_branch
        %365 = sbr.rel (%p363) target = $region40
      $region39: #{previt_trans.2} parent=5 // pred_region
        %s366 = ssub.s32 %s18, 2
        // Predicated region
        $region41: #{previt_trans.2} parent=39 // pred_check
          %p367 = pneg %p115
        $region42: #{previt_trans.2} parent=39 // pred_check_branch
          %369 = sbr.rel (%p367) target = $region44
        $region43: #{previt_trans.2} parent=39 // pred_region
          %s370 = sand.u32 %s100, 1
          %s371 = scalar_lea.sflag [#allocation8], %s370
          %s372 = sand.u32 %s100, 1
          %s373 = smul.addr %s372, 16
          %s374 = scalar_lea.vmem [#allocation7], %s373
          %375 = dma.done %s371, 256
        $region44: #{previt_trans.2} parent=39 // pred_fallthru
          _
      $region40: #{previt_trans.2} parent=5 // pred_fallthru
        _
    $region6: #{previt_trans.2} parent=1 // loop_footer
      %s22 = sadd.s32 1, %s18
    $region7: #{previt_trans.2} parent=1 // loop_footer_branch
      %17 = sbr.rel target = $region3
    $region8: #{previt_trans.2} parent=1 // loop_exit
      _
    %376 = vsyncpa [#allocation8], 1
    %s377 = scalar_lea.sflag [#allocation8], 1
    %378 = vsyncpa %s377, 1

// kernel: previt_trans.2
$region0: #{previt_trans.2}
  #allocation0 [shape = 'u32[]', space=smem, size = 0x4, offset = 0x4, fixed_abs, tag = 'smem constant byte address 0x4 - core index']
  #allocation1 [shape = 'u32[144,128]{1,0:T(1,128)}', space=vmem, size = 0x12000, scoped, tag = 'internal scratch']
  #allocation2 [shape = 'u32[2048]{0}', space=vmem, size = 0x2000, scoped, tag = 'scoped memory for previt_trans.2']
  #allocation3 [shape = 'u32[2048]{0}', space=vmem, size = 0x2000, scoped, tag = 'scoped memory for previt_trans.2']
  #allocation4 [shape = 'u32[2048]{0}', space=vmem, size = 0x2000, scoped, tag = 'scoped memory for previt_trans.2']
  #allocation5 [shape = 'u32[2048]{0}', space=vmem, size = 0x2000, scoped, tag = 'scoped memory for previt_trans.2']
  #allocation6 [shape = 'u32[2048]{0}', space=vmem, size = 0x2000, scoped, tag = 'scoped memory for previt_trans.2']
  %s0 = inlined_call_operand.vmem [shape: bf16[128,32], index: 0, kind: input, shape index: {}]
  %s1 = inlined_call_operand.vmem [shape: f32[16,32], index: 1, kind: input, shape index: {}]
  %s2 = inlined_call_operand.vmem [shape: bf16[32,64], index: 2, kind: input, shape index: {}]
  %s3 = inlined_call_operand.<no memory space> [shape: bf16[], index: 3, kind: input, shape index: {}]
  %s4 = inlined_call_operand.hbm [shape: f32[32,32], index: 4, kind: output, shape index: {}]
  %s5 = sld [smem:[#allocation0]]
  $region45: #{previt_trans.2} parent=0
    _
  %s7 = ssub.s32 1, %s5
  %s8 = scalar_select 0, %s7, %s5
  %v9 = vstv %s3
  %v10 = vunpack.i.l.bf16 %v9
  %v12 = vunpack.i.h.bf16 %v9
  $region1: #{previt_trans.2} parent=0
    #allocation7 [shape = 'u8[16384]{0}', space=vmem, size = 0x4000, scoped, tag = 'output window, operand 0']
    #allocation8 [shape = 's32[2]{0}', space=sflag, size = 0x8, scoped, tag = 'scoped memory for previt_trans.2']
    %14 = vsyncpa [#allocation8], 0
    %s15 = scalar_lea.sflag [#allocation8], 1
    %16 = vsyncpa %s15, 0
    loop: start=0, step=1, limit=4
    $region2: #{previt_trans.2} parent=1 // loop_pre_header
      _
    $region3: #{previt_trans.2} parent=1 // loop_header
      %s18 = sphi 0, %s22
      %p19 = scmp.ge.s32.totalorder %s18, 4
      %s28 = sphi 0, %s30
      %s31 = sphi 0, %s28
      %s32 = sphi 0, %s31
      %s48 = sphi 0, %s32
      %s52 = sphi 0, %s52
      %s54 = sphi 0, %s52
      %s55 = sphi 0, %s54
      %s69 = sphi 0, %s55
      %s73 = sphi 0, %s73
      %s75 = sphi 0, %s73
      %s76 = sphi 0, %s75
      %s90 = sphi 0, %s76
      %s96 = sphi 0, %s98
      %s99 = sphi 0, %s96
      %s100 = sphi 0, %s99
      %s116 = sphi 0, %s100
    $region4: #{previt_trans.2} parent=1 // loop_header_branch
      %21 = sbr.rel (%p19) target = $region8
    $region5: #{previt_trans.2} parent=1 // loop_body
      %s23 = ssub.s32 %s18, 1
      %s24 = ssub.s32 %s18, 2
      %s25 = sadd.s32 %s18, 1
      %s26 = ssub.s32 %s18, %s25
      %p27 = scmp.eq.s32.totalorder %s26, 0
      %s29 = sadd.s32 %s28, 1
      %s30 = scalar_select %p27, %s28, %s29
      %p33 = pneg %p27
      %p34 = scmp.eq.s32.totalorder %s18, 1
      %p35 = por %p33, %p34
      %p36 = scmp.ne.s32.totalorder %s28, %s31
      %p37 = scmp.eq.s32.totalorder %s18, 0
      %p38 = por %p36, %p37
      %p39 = scmp.ne.s32.totalorder %s28, %s31
      %p40 = scmp.eq.s32.totalorder %s23, 1
      %p41 = por %p39, %p40
      %p42 = scmp.ne.s32.totalorder %s31, %s32
      %p43 = scmp.eq.s32.totalorder %s23, 0
      %p44 = por %p42, %p43
      %p45 = scmp.ne.s32.totalorder %s31, %s32
      %p46 = scmp.eq.s32.totalorder %s24, 1
      %p47 = por %p45, %p46
      %p49 = scmp.ne.s32.totalorder %s32, %s48
      %p50 = scmp.eq.s32.totalorder %s24, 0
      %p51 = por %p49, %p50
      %s53 = sadd.s32 %s52, 1
      %p56 = scmp.eq.s32.totalorder %s18, 1
      %p57 = scmp.ne.s32.totalorder %s52, %s54
      %p58 = scmp.eq.s32.totalorder %s18, 0
      %p59 = por %p57, %p58
      %p60 = scmp.ne.s32.totalorder %s52, %s54
      %p61 = scmp.eq.s32.totalorder %s23, 1
      %p62 = por %p60, %p61
      %p63 = scmp.ne.s32.totalorder %s54, %s55
      %p64 = scmp.eq.s32.totalorder %s23, 0
      %p65 = por %p63, %p64
      %p66 = scmp.ne.s32.totalorder %s54, %s55
      %p67 = scmp.eq.s32.totalorder %s24, 1
      %p68 = por %p66, %p67
      %p70 = scmp.ne.s32.totalorder %s55, %s69
      %p71 = scmp.eq.s32.totalorder %s24, 0
      %p72 = por %p70, %p71
      %s74 = sadd.s32 %s73, 1
      %p77 = scmp.eq.s32.totalorder %s18, 1
      %p78 = scmp.ne.s32.totalorder %s73, %s75
      %p79 = scmp.eq.s32.totalorder %s18, 0
      %p80 = por %p78, %p79
      %p81 = scmp.ne.s32.totalorder %s73, %s75
      %p82 = scmp.eq.s32.totalorder %s23, 1
      %p83 = por %p81, %p82
      %p84 = scmp.ne.s32.totalorder %s75, %s76
      %p85 = scmp.eq.s32.totalorder %s23, 0
      %p86 = por %p84, %p85
      %p87 = scmp.ne.s32.totalorder %s75, %s76
      %p88 = scmp.eq.s32.totalorder %s24, 1
      %p89 = por %p87, %p88
      %p91 = scmp.ne.s32.totalorder %s76, %s90
      %p92 = scmp.eq.s32.totalorder %s24, 0
      %p93 = por %p91, %p92
      %s94 = ssub.s32 %s18, %s25
      %p95 = scmp.eq.s32.totalorder %s94, 0
      %s97 = sadd.s32 %s96, 1
      %s98 = scalar_select %p95, %s96, %s97
      %p101 = pneg %p95
      %p102 = scmp.eq.s32.totalorder %s18, 1
      %p103 = por %p101, %p102
      %p104 = scmp.ne.s32.totalorder %s96, %s99
      %p105 = scmp.eq.s32.totalorder %s18, 0
      %p106 = por %p104, %p105
      %p107 = scmp.ne.s32.totalorder %s96, %s99
      %p108 = scmp.eq.s32.totalorder %s23, 1
      %p109 = por %p107, %p108
      %p110 = scmp.ne.s32.totalorder %s99, %s100
      %p111 = scmp.eq.s32.totalorder %s23, 0
      %p112 = por %p110, %p111
      %p113 = scmp.ne.s32.totalorder %s99, %s100
      %p114 = scmp.eq.s32.totalorder %s24, 1
      %p115 = por %p113, %p114
      %p117 = scmp.ne.s32.totalorder %s100, %s116
      %p118 = scmp.eq.s32.totalorder %s24, 0
      %p119 = por %p117, %p118
      %p120 = scmp.le.s32.totalorder 1, %s18
      %p121 = scmp.lt.s32.totalorder %s18, 3
      %p122 = pnand %p120, %p121
      %p123 = pneg %p122
      // Predicated region
      $region9: #{previt_trans.2} parent=5 // pred_check
        _
      $region10: #{previt_trans.2} parent=5 // pred_check_branch
        %125 = sbr.rel (%p122) target = $region12
      $region11: #{previt_trans.2} parent=5 // pred_region
        %s126 = ssub.s32 %s18, 1
        // Predicated region
        $region13: #{previt_trans.2} parent=11 // pred_check
          %p127 = pneg %p65
        $region14: #{previt_trans.2} parent=11 // pred_check_branch
          %129 = sbr.rel (%p127) target = $region16
        $region15: #{previt_trans.2} parent=11 // pred_region
          _
        $region16: #{previt_trans.2} parent=11 // pred_fallthru
          _
        // Predicated region
        $region17: #{previt_trans.2} parent=11 // pred_check
          %p130 = pneg %p86
        $region18: #{previt_trans.2} parent=11 // pred_check_branch
          %132 = sbr.rel (%p130) target = $region20
        $region19: #{previt_trans.2} parent=11 // pred_region
          _
        $region20: #{previt_trans.2} parent=11 // pred_fallthru
          _
      $region12: #{previt_trans.2} parent=5 // pred_fallthru
        _
      %p133 = scmp.lt.s32.totalorder %s18, 2
      // Predicated region
      $region21: #{previt_trans.2} parent=5 // pred_check
        %p134 = pneg %p133
      $region22: #{previt_trans.2} parent=5 // pred_check_branch
        %136 = sbr.rel (%p134) target = $region24
      $region23: #{previt_trans.2} parent=5 // pred_region
        // Predicated region
        $region25: #{previt_trans.2} parent=23 // pred_check
          %p137 = pneg %p38
        $region26: #{previt_trans.2} parent=23 // pred_check_branch
          %139 = sbr.rel (%p137) target = $region28
        $region27: #{previt_trans.2} parent=23 // pred_region
          %s140 = smul.u32 2, %s18
          %p141 = scmp.lt.s32.totalorder %s140, 3
          %s142 = scalar_select %p141, %s140, 3
          %s143 = smul.addr %s142, 4
          %s144 = scalar_lea.vmem %s2, %s143
          %s145 = smul.u32 2, %s18
        $region28: #{previt_trans.2} parent=23 // pred_fallthru
          _
      $region24: #{previt_trans.2} parent=5 // pred_fallthru
        _
      %p146 = scmp.le.s32.totalorder 1, %s18
      %p147 = scmp.lt.s32.totalorder %s18, 3
      %p148 = pnand %p146, %p147
      %p149 = pneg %p148
      // Predicated region
      $region29: #{previt_trans.2} parent=5 // pred_check
        _
      $region30: #{previt_trans.2} parent=5 // pred_check_branch
        %151 = sbr.rel (%p148) target = $region32
      $region31: #{previt_trans.2} parent=5 // pred_region
        #allocation9 [shape = 'u8[4096]{0}', space=vmem, size = 0x1000, dematerialized = true, scoped, tag = 'FusionAdapter Buffer %fusion.1 = bf16[32,128]{1,0:T(8,128)(2,1)} fusion(%param_2.1, %param_3), kind=kLoop, calls=%fused_computation.3.clone, metadata={op_name="jit(previt_trans)/jit(_pad)/pad" stack_frame_id=11}']
        %s152 = ssub.s32 %s18, 1
        %s153 = smul.u32 2, %s23
        %p154 = scmp.lt.s32.totalorder %s153, 3
        %s155 = scalar_select %p154, %s153, 3
        %s156 = smul.addr %s155, 4
        %s157 = scalar_lea.vmem %s2, %s156
        %p158 = pneg %p44
        %p159 = pneg %p41
        %p160 = pneg %p65
        %p161 = pneg %p62
        %p162 = pneg %p86
        %p163 = pneg %p83
        %p164 = pneg %p112
        %p165 = pneg %p109
        %s166 = sand.u32 %s99, 1
        %s167 = scalar_lea.sflag [#allocation8], %s166
        %s168 = sand.u32 %s99, 1
        %s169 = smul.addr %s168, 16
        %s170 = scalar_lea.vmem [#allocation7], %s169
        %s171 = smul.u32 2, %s23
        %p172 = scmp.lt.s32.totalorder %s171, 3
        %s173 = scalar_select %p172, %s171, 3
        %s174 = smul.addr %s173, 4
        %s175 = scalar_lea.vmem %s2, %s174
        %s176 = smul.u32 2, %s23
        %s177 = smul.u32 2, %s23
        %s179 = sor.u32 255, 127
        %s180 = sand.u32 %s179, 85
        %s181 = sshrl.u32 %s180, 1
        %s182 = sor.u32 %s180, %s181
        %s183 = sand.u32 51, %s182
        %s184 = sshrl.u32 %s183, 2
        %s185 = sor.u32 %s183, %s184
        %s186 = sand.u32 15, %s185
        %v187 = vld [vmem:[%s175] sm:%s186]
        %v188 = vunpack.c.l.bf16 %v187
        %v189 = vunpack.c.h.bf16 %v187
        %v190 = vlaneseq
        %v191 = vand.u32 %v190, 127
        %vm193 = vcmp.lt.s32.totalorder %v191, 64
        %v194 = vsel %vm193, %v188, %v10
        %v195 = vpack.c.bf16 0.0, %v194
        %s197 = ssub.s32 16, 1
        %198 = vst [vmem:[#allocation9] sm:%s197] %v195
        %s199 = scalar_lea.vmem %s175, 4
        %s201 = sor.u32 255, 127
        %s202 = sand.u32 %s201, 85
        %s203 = sshrl.u32 %s202, 1
        %s204 = sor.u32 %s202, %s203
        %s205 = sand.u32 51, %s204
        %s206 = sshrl.u32 %s205, 2
        %s207 = sor.u32 %s205, %s206
        %s208 = sand.u32 15, %s207
        %v209 = vld [vmem:[%s199] sm:%s208]
        %v210 = vunpack.c.l.bf16 %v209
        %v211 = vunpack.c.h.bf16 %v209
        %v212 = vlaneseq
        %v213 = vand.u32 %v212, 127
        %vm215 = vcmp.lt.s32.totalorder %v213, 64
        %v216 = vsel %vm215, %v210, %v10
        %s217 = scalar_lea.vmem [#allocation9], 4
        %v218 = vpack.c.bf16 0.0, %v216
        %s220 = ssub.s32 16, 1
        %221 = vst [vmem:[%s217] sm:%s220] %v218
        %v223 = vld [vmem:[#allocation9] sm:$0xf]
        %v224 = vld [vmem:[#allocation9 + $0x4] sm:$0xf]
        %v225 = vld [vmem:[%s0] sm:$0xf]
        %v226 = vld [vmem:[%s0 + $0x4] sm:$0xf]
        %v227 = vld [vmem:[%s0 + $0x8] sm:$0xf]
        %v228 = vld [vmem:[%s0 + $0xc] sm:$0xf]
        %v229 = vld [vmem:[%s0 + $0x10] sm:$0xf]
        %v230 = vld [vmem:[%s0 + $0x14] sm:$0xf]
        %v231 = vld [vmem:[%s0 + $0x18] sm:$0xf]
        %v232 = vld [vmem:[%s0 + $0x1c] sm:$0xf]
        %v233 = vld [vmem:[%s0 + $0x20] sm:$0xf]
        %v234 = vld [vmem:[%s0 + $0x24] sm:$0xf]
        %v235 = vld [vmem:[%s0 + $0x28] sm:$0xf]
        %v236 = vld [vmem:[%s0 + $0x2c] sm:$0xf]
        %v237 = vld [vmem:[%s0 + $0x30] sm:$0xf]
        %v238 = vld [vmem:[%s0 + $0x34] sm:$0xf]
        %v239 = vld [vmem:[%s0 + $0x38] sm:$0xf]
        %v240 = vld [vmem:[%s0 + $0x3c] sm:$0xf]
        %v241 = vld [vmem:[%s1] sm:$0xff]
        %v242 = vld [vmem:[%s1 + $0x8] sm:$0xff]
        %v245 = vunpack.c.l.b16 %v223
        %v246 = vunpack.c.l.b16 %v224
        %v247 = vpack.c.b16 %v246, %v245
        %v265 = vunpack.c.l.b16 %v225
        %v266 = vunpack.c.l.b16 %v226
        %v267 = vunpack.c.l.b16 %v227
        %v268 = vunpack.c.l.b16 %v228
        %v269 = vunpack.c.l.b16 %v229
        %v270 = vunpack.c.l.b16 %v230
        %v271 = vunpack.c.l.b16 %v231
        %v272 = vunpack.c.l.b16 %v232
        %v273 = vunpack.c.l.b16 %v233
        %v274 = vunpack.c.l.b16 %v234
        %v275 = vunpack.c.l.b16 %v235
        %v276 = vunpack.c.l.b16 %v236
        %v277 = vunpack.c.l.b16 %v237
        %v278 = vunpack.c.l.b16 %v238
        %v279 = vunpack.c.l.b16 %v239
        %v280 = vunpack.c.l.b16 %v240
        %v281 = vpack.c.b16 %v266, %v265
        %v282 = vpack.c.b16 %v268, %v267
        %v283 = vpack.c.b16 %v270, %v269
        %v284 = vpack.c.b16 %v272, %v271
        %v285 = vpack.c.b16 %v274, %v273
        %v286 = vpack.c.b16 %v276, %v275
        %v287 = vpack.c.b16 %v278, %v277
        %v288 = vpack.c.b16 %v280, %v279
        %297 = vmatprep.subr.bf16.mxu0 0
        %298 = vmatpush1.bf16.msra.mxu0 %v288
        %299 = vmatprep.subr.bf16.mxu0 0
        %300 = vmatpush1.bf16.msra.mxu0 %v287
        %301 = vmatprep.subr.bf16.mxu0 0
        %302 = vmatpush1.bf16.msra.mxu0 %v286
        %303 = vmatprep.subr.bf16.mxu0 0
        %304 = vmatpush1.bf16.msra.mxu0 %v285
        %305 = vmatprep.subr.bf16.mxu0 0
        %306 = vmatpush1.bf16.msra.mxu0 %v284
        %307 = vmatprep.subr.bf16.mxu0 0
        %308 = vmatpush1.bf16.msra.mxu0 %v283
        %309 = vmatprep.subr.bf16.mxu0 0
        %310 = vmatpush1.bf16.msra.mxu0 %v282
        %311 = vmatprep.subr.bf16.mxu0 0
        %312 = vmatpush1.bf16.msra.mxu0 %v281
        %313 = vmatprep.subr.bf16.mxu0 0
        %314 = vmatpush2.bf16.msra.mxu0 0
        %315 = vmatprep.subr.bf16.mxu0 0
        %316 = vmatpush2.bf16.msra.mxu0 0
        %317 = vmatprep.subr.bf16.mxu0 0
        %318 = vmatpush2.bf16.msra.mxu0 0
        %319 = vmatprep.subr.bf16.mxu0 0
        %320 = vmatpush2.bf16.msra.mxu0 0
        %321 = vmatprep.subr.bf16.mxu0 0
        %322 = vmatpush2.bf16.msra.mxu0 0
        %323 = vmatprep.subr.bf16.mxu0 0
        %324 = vmatpush2.bf16.msra.mxu0 0
        %325 = vmatprep.subr.bf16.mxu0 0
        %326 = vmatpush2.bf16.msra.mxu0 0
        %327 = vmatprep.subr.bf16.mxu0 0
        %328 = vmatpush2.bf16.msra.mxu0 0
        %329 = vmatprep.mubr.bf16.mxu0 0
        %330 = vmatmul.mubr.bf16.gmra.mxu0 %v247
        %v331 = vpop.f32.mrf.mxu0
        %v332 = vadd.f32 %v241, %v331
        %v333 = vpop.f32.mrf.mxu0
        %v334 = vpop.f32.mrf.mxu0
        %v335 = vadd.f32 %v242, %v334
        %v336 = vpop.f32.mrf.mxu0
        %337 = vdwg.mxu0
        %vm338 = vcmask 261120
        %339 = vst.msk [vmem:[%s170] sm:$0xff] %vm338, %v332
        %340 = vst.msk [vmem:[%s170 + $0x8] sm:$0xff] %vm338, %v335
        %s341 = sand.u32 %s99, 1
        %s342 = scalar_lea.sflag [#allocation8], %s341
        %s343 = sand.u32 %s99, 1
        %s344 = smul.addr %s343, 16
        %s345 = scalar_lea.vmem [#allocation7], %s344
        // Predicated region
        $region33: #{previt_trans.2} parent=31 // pred_check
          %p346 = pneg %p109
        $region34: #{previt_trans.2} parent=31 // pred_check_branch
          %348 = sbr.rel (%p346) target = $region36
        $region35: #{previt_trans.2} parent=31 // pred_region
          %s349 = smul.u32 2, %s23
          %s351 = ssub.s32 256, 256
          %352 = vsyncadd %s342, %s351
          %s353 = smul.addr %s349, 128
          %s354 = scalar_lea.hbm %s4, %s353
          %s355 = sshll.u32 %s345, 4
          %s356 = int_to_ptr.vmem [resolvable:$true] %s355
          %361 = dma.vmem_to_hbm [thread:$0]  %s356, 256, %s354, %s342, 128, 128, 8
        $region36: #{previt_trans.2} parent=31 // pred_fallthru
          _
      $region32: #{previt_trans.2} parent=5 // pred_fallthru
        _
      %p362 = scmp.le.s32.totalorder 2, %s18
      // Predicated region
      $region37: #{previt_trans.2} parent=5 // pred_check
        %p363 = pneg %p362
      $region38: #{previt_trans.2} parent=5 // pred_check_branch
        %365 = sbr.rel (%p363) target = $region40
      $region39: #{previt_trans.2} parent=5 // pred_region
        %s366 = ssub.s32 %s18, 2
        // Predicated region
        $region41: #{previt_trans.2} parent=39 // pred_check
          %p367 = pneg %p115
        $region42: #{previt_trans.2} parent=39 // pred_check_branch
          %369 = sbr.rel (%p367) target = $region44
        $region43: #{previt_trans.2} parent=39 // pred_region
          %s370 = sand.u32 %s100, 1
          %s371 = scalar_lea.sflag [#allocation8], %s370
          %s372 = sand.u32 %s100, 1
          %s373 = smul.addr %s372, 16
          %s374 = scalar_lea.vmem [#allocation7], %s373
          %375 = dma.done %s371, 256
        $region44: #{previt_trans.2} parent=39 // pred_fallthru
          _
      $region40: #{previt_trans.2} parent=5 // pred_fallthru
        _
    $region6: #{previt_trans.2} parent=1 // loop_footer
      %s22 = sadd.s32 1, %s18
    $region7: #{previt_trans.2} parent=1 // loop_footer_branch
      %17 = sbr.rel target = $region3
    $region8: #{previt_trans.2} parent=1 // loop_exit
      _
    %376 = vsyncpa [#allocation8], 1
    %s377 = scalar_lea.sflag [#allocation8], 1
    %378 = vsyncpa %s377, 1

</llo_original>
